<compile_context>
chip_gen: v7x
topology: tpu7x:2x2x1
jax: 0.10.0
libtpu: 0.0.40
codegen_flags: <defaults>
</compile_context>

<pallas_src>
from functools import partial

import jax
import jax.numpy as jnp
from jax.experimental import pallas as pl
from jax.experimental.pallas import tpu as pltpu

NEG_INF = float("-inf")
_BUF1_BYTES = 2 << 20  # weights larger than this are single-buffered (constant index_map)


# ---------------------------------------------------------------------------
# Hardware / tiling helpers
# ---------------------------------------------------------------------------
def _vmem_capacity():
    """Generation-aware VMEM size (64 MiB on v7x, 128 MiB on v5e/v6e)."""
    try:
        return int(pltpu.get_tpu_info().vmem_capacity_bytes)
    except Exception:
        return 64 << 20  # conservative default (v7x)


def _mosaic_params(dim_sem, footprint_bytes):
    cap = _vmem_capacity()
    limit = int(min(cap, max(int(footprint_bytes * 1.5) + (4 << 20), 32 << 20)))
    return pltpu.CompilerParams(dimension_semantics=dim_sem, vmem_limit_bytes=limit)


def _w_spec(shape, index_map, nbytes):
    """BlockSpec for a fully-resident weight (constant index_map).  Large weights are
    single-buffered so they are not pointlessly double-buffered in VMEM."""
    if nbytes >= _BUF1_BYTES:
        return pl.BlockSpec(shape, index_map, pipeline_mode=pl.Buffered(1))
    return pl.BlockSpec(shape, index_map)


def _pick_seq_tile(seq, per_row_bytes, budget):
    """Sequence tile for the projection kernels.  Must be a multiple of 128 (it becomes
    the lane dim of the transposed K output) or the full sequence length."""
    c = (min(seq, 1024) // 128) * 128
    while c >= 128:
        if seq % c == 0 and c * per_row_bytes <= budget:
            return c
        c -= 128
    return seq


def _pick_tile8(total):
    for c in (512, 256, 128, 64, 32, 16, 8):
        if c <= total and total % c == 0:
            return c
    return total


def _choose_q_tile(q_len, seq_len, d_k, d_v, in_bytes, prev_bytes, has_mask,
                   has_kpm, need_weights, attn_bytes, res_attention):
    """Largest q-tile whose double-buffered blocks + f32 temporaries fit ~half of this
    generation's VMEM.  Counts resident K/V and uses real dtype sizes."""
    budget = _vmem_capacity() // 2
    fixed = 2 * seq_len * (d_k + d_v) * in_bytes  # K, V blocks (x2 buffers)
    if has_kpm:
        fixed += 2 * seq_len * 4
    cands = [c for c in (1024, 512, 256, 128, 64, 32, 16, 8)
             if c <= q_len and q_len % c == 0]
    if not cands:
        cands = [q_len]

    def footprint(tq):
        per_row = 2 * (d_k + d_v) * in_bytes      # q in + ctx out blocks
        per_row += 3 * seq_len * 4                # f32 scores / exp temporaries
        if prev_bytes:
            per_row += 2 * seq_len * prev_bytes
        if has_mask:
            per_row += 2 * seq_len * 4
        if need_weights:
            per_row += 2 * seq_len * attn_bytes
        if res_attention:
            per_row += 2 * seq_len * 4
        return fixed + tq * per_row

    for tq in cands:
        if footprint(tq) <= budget:
            return tq, footprint(tq)
    return cands[-1], footprint(cands[-1])


# ---------------------------------------------------------------------------
# Fused QKV projection (self-attention path): y = x @ W_qkv + b, head-split into
#   q_s [bs*h, seq, d_k]   (scale already folded into the Q columns of W_qkv)
#   k_s [bs*h, d_k, seq]   (pre-transposed so SDPA needs no per-q-tile K transpose)
#   v_s [bs*h, seq, d_v]
# ---------------------------------------------------------------------------
def _proj_qkv_kernel(x_ref, w_ref, b_ref, q_ref, k_ref, v_ref, *, n_heads, d_k, d_v):
    x = x_ref[...].astype(w_ref.dtype)                                   # (TS, d_model)
    y = jnp.dot(x, w_ref[...], preferred_element_type=jnp.float32) + b_ref[...]
    q_cols = n_heads * d_k
    k_cols = n_heads * d_k
    # One transpose of the whole K slab; per-head slices below are sublane slices and
    # the (d_k, TS) stores are lane-dense when TS is a multiple of 128.
    y_kT = y[:, q_cols:q_cols + k_cols].T                                # (H*d_k, TS)
    for h in range(n_heads):
        q_ref[h, :, :] = y[:, h * d_k:(h + 1) * d_k].astype(q_ref.dtype)
        k_ref[h, :, :] = y_kT[h * d_k:(h + 1) * d_k, :].astype(k_ref.dtype)
        v_ref[h, :, :] = y[:, q_cols + k_cols + h * d_v:
                              q_cols + k_cols + (h + 1) * d_v].astype(v_ref.dtype)


def project_qkv(x, w_qkv, b_qkv, n_heads, d_k, d_v, compute_dtype):
    bs, seq, d_model = x.shape
    d_out = w_qkv.shape[1]
    cd_b = jnp.dtype(compute_dtype).itemsize
    x_b = jnp.dtype(x.dtype).itemsize
    w_bytes = d_model * d_out * cd_b
    per_row = (2 * d_model * x_b + d_out * 4 + n_heads * d_k * 4
               + 2 * n_heads * (2 * d_k + d_v) * cd_b)
    budget = max(_vmem_capacity() // 2 - 2 * w_bytes, 4 << 20)
    ts = _pick_seq_tile(seq, per_row, budget)
    w_buf = 1 if w_bytes >= _BUF1_BYTES else 2
    fp = ts * per_row + w_buf * w_bytes + 2 * d_out * 4
    BH = bs * n_heads
    return pl.pallas_call(
        partial(_proj_qkv_kernel, n_heads=n_heads, d_k=d_k, d_v=d_v),
        grid=(bs, seq // ts),
        in_specs=[
            pl.BlockSpec((None, ts, d_model), lambda b, s: (b, s, 0)),
            _w_spec((d_model, d_out), lambda b, s: (0, 0), w_bytes),
            pl.BlockSpec((1, d_out), lambda b, s: (0, 0)),
        ],
        out_specs=(
            pl.BlockSpec((n_heads, ts, d_k), lambda b, s: (b, s, 0)),
            pl.BlockSpec((n_heads, d_k, ts), lambda b, s: (b, 0, s)),
            pl.BlockSpec((n_heads, ts, d_v), lambda b, s: (b, s, 0)),
        ),
        out_shape=(
            jax.ShapeDtypeStruct((BH, seq, d_k), compute_dtype),
            jax.ShapeDtypeStruct((BH, d_k, seq), compute_dtype),
            jax.ShapeDtypeStruct((BH, seq, d_v), compute_dtype),
        ),
        compiler_params=_mosaic_params(("parallel", "parallel"), fp),
    )(x, w_qkv.astype(compute_dtype), b_qkv.reshape(1, d_out).astype(jnp.float32))


# ---------------------------------------------------------------------------
# Single-tensor head-split projection (cross-attention path, K/V != Q).
# ---------------------------------------------------------------------------
def _proj_heads_kernel(x_ref, w_ref, b_ref, o_ref, *, n_heads, d_head, transpose_out):
    x = x_ref[...].astype(w_ref.dtype)
    y = jnp.dot(x, w_ref[...], preferred_element_type=jnp.float32) + b_ref[...]
    if transpose_out:
        yT = y.T
        for h in range(n_heads):
            o_ref[h, :, :] = yT[h * d_head:(h + 1) * d_head, :].astype(o_ref.dtype)
    else:
        for h in range(n_heads):
            o_ref[h, :, :] = y[:, h * d_head:(h + 1) * d_head].astype(o_ref.dtype)


def project_heads(x, w, b, n_heads, d_head, compute_dtype, transpose_out=False):
    bs, seq, d_model = x.shape
    d_out = w.shape[1]
    cd_b = jnp.dtype(compute_dtype).itemsize
    x_b = jnp.dtype(x.dtype).itemsize
    w_bytes = d_model * d_out * cd_b
    per_row = 2 * d_model * x_b + 2 * d_out * 4 + 2 * d_out * cd_b
    budget = max(_vmem_capacity() // 2 - 2 * w_bytes, 4 << 20)
    ts = _pick_seq_tile(seq, per_row, budget)
    w_buf = 1 if w_bytes >= _BUF1_BYTES else 2
    fp = ts * per_row + w_buf * w_bytes + 2 * d_out * 4
    BH = bs * n_heads
    if transpose_out:
        out_spec = pl.BlockSpec((n_heads, d_head, ts), lambda b, s: (b, 0, s))
        out_shape = jax.ShapeDtypeStruct((BH, d_head, seq), compute_dtype)
    else:
        out_spec = pl.BlockSpec((n_heads, ts, d_head), lambda b, s: (b, s, 0))
        out_shape = jax.ShapeDtypeStruct((BH, seq, d_head), compute_dtype)
    return pl.pallas_call(
        partial(_proj_heads_kernel, n_heads=n_heads, d_head=d_head,
                transpose_out=transpose_out),
        grid=(bs, seq // ts),
        in_specs=[
            pl.BlockSpec((None, ts, d_model), lambda b, s: (b, s, 0)),
            _w_spec((d_model, d_out), lambda b, s: (0, 0), w_bytes),
            pl.BlockSpec((1, d_out), lambda b, s: (0, 0)),
        ],
        out_specs=out_spec,
        out_shape=out_shape,
        compiler_params=_mosaic_params(("parallel", "parallel"), fp),
    )(x, w.astype(compute_dtype), b.reshape(1, d_out).astype(jnp.float32))


# ---------------------------------------------------------------------------
# Scaled-dot-product attention, grid = (bs*n_heads, q_tiles).
#   q: [BH, q, d_k] (scale pre-folded)   k: [BH, d_k, s]   v: [BH, s, d_v]
# prev / attn_mask / key_padding_mask are optional additive biases (separate variants).
# Softmax is f32; MXU operands are compute_dtype with f32 accumulation.
# ---------------------------------------------------------------------------
def _sdpa_kernel(*refs, has_prev, has_mask, has_kpm, need_weights, res_attention,
                 compute_dtype):
    it = iter(refs)
    q_ref, k_ref, v_ref = next(it), next(it), next(it)
    prev_ref = next(it) if has_prev else None
    mask_ref = next(it) if has_mask else None
    kpm_ref = next(it) if has_kpm else None
    out_ref = next(it)
    attn_ref = next(it) if need_weights else None
    scores_ref = next(it) if res_attention else None

    # QK^T: K block is pre-transposed (d_k, S) so this is a plain MXU matmul.
    scores = jnp.dot(q_ref[...], k_ref[...], preferred_element_type=jnp.float32)
    if has_prev:
        scores = scores + prev_ref[...].astype(jnp.float32)
    if has_mask:
        scores = scores + mask_ref[...]        # (tq, S) additive (-inf for bool masks)
    if has_kpm:
        scores = scores + kpm_ref[...]         # (1, S) broadcasts over rows
    if res_attention:
        scores_ref[...] = scores.astype(scores_ref.dtype)

    # NOTE: a fully-masked row (all -inf) yields NaN, matching torch.softmax.
    m = jnp.max(scores, axis=-1, keepdims=True)
    e = jnp.exp(scores - m)
    attn = e * pl.reciprocal(jnp.sum(e, axis=-1, keepdims=True), approx=False)
    if need_weights:
        attn_ref[...] = attn.astype(attn_ref.dtype)

    out_ref[...] = jnp.dot(attn.astype(compute_dtype), v_ref[...],
                           preferred_element_type=jnp.float32).astype(out_ref.dtype)


def sdpa(q, k, v, prev, attn_mask_add, kpm_add, need_weights, res_attention,
         compute_dtype, attn_dtype, scores_dtype):
    BH, q_len, d_k = q.shape
    seq_len = k.shape[2]
    d_v = v.shape[2]
    in_b = jnp.dtype(compute_dtype).itemsize
    prev_b = 0 if prev is None else jnp.dtype(prev.dtype).itemsize
    attn_b = jnp.dtype(attn_dtype).itemsize
    tq, fp = _choose_q_tile(q_len, seq_len, d_k, d_v, in_b, prev_b,
                            attn_mask_add is not None, kpm_add is not None,
                            need_weights, attn_b, res_attention)
    grid = (BH, q_len // tq)  # large leading parallel axis (v7x megacore friendly)

    in_specs = [
        pl.BlockSpec((None, tq, d_k), lambda bh, i: (bh, i, 0)),
        pl.BlockSpec((None, d_k, seq_len), lambda bh, i: (bh, 0, 0)),   # revisited
        pl.BlockSpec((None, seq_len, d_v), lambda bh, i: (bh, 0, 0)),   # revisited
    ]
    args = [q, k, v]
    if prev is not None:
        in_specs.append(pl.BlockSpec((None, tq, seq_len), lambda bh, i: (bh, i, 0)))
        args.append(prev)
    if attn_mask_add is not None:
        in_specs.append(pl.BlockSpec((tq, seq_len), lambda bh, i: (i, 0)))
        args.append(attn_mask_add)
    if kpm_add is not None:
        in_specs.append(pl.BlockSpec((None, 1, seq_len), lambda bh, i: (bh, 0, 0)))
        args.append(kpm_add)

    out_specs = [pl.BlockSpec((None, tq, d_v), lambda bh, i: (bh, i, 0))]
    out_shapes = [jax.ShapeDtypeStruct((BH, q_len, d_v), compute_dtype)]
    if need_weights:
        out_specs.append(pl.BlockSpec((None, tq, seq_len), lambda bh, i: (bh, i, 0)))
        out_shapes.append(jax.ShapeDtypeStruct((BH, q_len, seq_len), attn_dtype))
    if res_attention:
        out_specs.append(pl.BlockSpec((None, tq, seq_len), lambda bh, i: (bh, i, 0)))
        out_shapes.append(jax.ShapeDtypeStruct((BH, q_len, seq_len), scores_dtype))

    kernel = partial(_sdpa_kernel,
                     has_prev=prev is not None,
                     has_mask=attn_mask_add is not None,
                     has_kpm=kpm_add is not None,
                     need_weights=need_weights,
                     res_attention=res_attention,
                     compute_dtype=compute_dtype)
    results = pl.pallas_call(
        kernel, grid=grid, in_specs=in_specs,
        out_specs=tuple(out_specs), out_shape=tuple(out_shapes),
        compiler_params=_mosaic_params(("parallel", "parallel"), fp),
    )(*args)
    if not isinstance(results, (list, tuple)):
        results = [results]
    ctx = results[0]
    idx = 1
    attn_w = None
    if need_weights:
        attn_w = results[idx]
        idx += 1
    scores = results[idx] if res_attention else None
    return ctx, attn_w, scores


# ---------------------------------------------------------------------------
# Merge heads + output projection: out[b,q,:] = sum_h ctx[b,h,q,:] @ W_O[h] + b_O
# Writes the lane-dense [bs, q_len, d_model] result directly.
# ---------------------------------------------------------------------------
def _out_proj_kernel(a_ref, w_ref, b_ref, o_ref, *, n_heads):
    tq = a_ref.shape[1]
    d_model = w_ref.shape[2]
    acc = jnp.zeros((tq, d_model), jnp.float32)
    for h in range(n_heads):
        acc = acc + jnp.dot(a_ref[h], w_ref[h], preferred_element_type=jnp.float32)
    o_ref[...] = (acc + b_ref[...]).astype(o_ref.dtype)


def out_projection(ctx, w_o, b_o, n_heads, out_dtype, compute_dtype):
    BH, q_len, d_v = ctx.shape
    bs = BH // n_heads
    d_model = w_o.shape[1]
    cd_b = jnp.dtype(compute_dtype).itemsize
    w3 = w_o.reshape(n_heads, d_v, d_model).astype(compute_dtype)
    w_bytes = n_heads * d_v * d_model * cd_b
    tq = _pick_tile8(q_len)
    w_buf = 1 if w_bytes >= _BUF1_BYTES else 2
    fp = (2 * n_heads * tq * d_v * cd_b + w_buf * w_bytes + 2 * d_model * 4
          + 2 * tq * d_model * jnp.dtype(out_dtype).itemsize + tq * d_model * 4)
    return pl.pallas_call(
        partial(_out_proj_kernel, n_heads=n_heads),
        grid=(bs, q_len // tq),
        in_specs=[
            pl.BlockSpec((n_heads, tq, d_v), lambda b, i: (b, i, 0)),
            _w_spec((n_heads, d_v, d_model), lambda b, i: (0, 0, 0), w_bytes),
            pl.BlockSpec((1, d_model), lambda b, i: (0, 0)),
        ],
        out_specs=pl.BlockSpec((None, tq, d_model), lambda b, i: (b, i, 0)),
        out_shape=jax.ShapeDtypeStruct((bs, q_len, d_model), out_dtype),
        compiler_params=_mosaic_params(("parallel", "parallel"), fp),
    )(ctx, w3, b_o.reshape(1, d_model).astype(jnp.float32))


# ---------------------------------------------------------------------------
# Parameter init (PyTorch-Linear-like uniform init); scale folded into W_Q / b_Q.
# ---------------------------------------------------------------------------
def init_params(key, d_model, n_heads, d_k=None, d_v=None):
    d_k = d_model // n_heads if d_k is None else d_k
    d_v = d_model // n_heads if d_v is None else d_v
    keys = jax.random.split(key, 8)

    def lin(kw, kb, d_in, d_out):
        bound = 1.0 / (d_in ** 0.5)
        w = jax.random.uniform(kw, (d_in, d_out), jnp.float32, -bound, bound)
        b = jax.random.uniform(kb, (d_out,), jnp.float32, -bound, bound)
        return w, b

    W_Q = lin(keys[0], keys[1], d_model, d_k * n_heads)
    W_K = lin(keys[2], keys[3], d_model, d_k * n_heads)
    W_V = lin(keys[4], keys[5], d_model, d_v * n_heads)
    W_O = lin(keys[6], keys[7], n_heads * d_v, d_model)
    # NOTE: matches the reference: scale uses d_model // n_heads even if d_k differs; lsa=False.
    scale = float((d_model // n_heads) ** -0.5)
    W_Q_scaled = (W_Q[0] * scale, W_Q[1] * scale)
    return {
        "n_heads": n_heads, "d_k": d_k, "d_v": d_v, "scale": scale,
        "W_Q": W_Q, "W_K": W_K, "W_V": W_V, "W_O": W_O,
        "W_Q_scaled": W_Q_scaled,
        # Pre-fused QKV weight (self-attention path, reads X once; Q columns pre-scaled).
        "W_QKV_scaled": (jnp.concatenate([W_Q_scaled[0], W_K[0], W_V[0]], axis=1),
                         jnp.concatenate([W_Q_scaled[1], W_K[1], W_V[1]], axis=0)),
    }


# ---------------------------------------------------------------------------
# Forward pass (mirrors _MultiheadAttention.forward, eval mode).
# ---------------------------------------------------------------------------
def multihead_attention(params, Q, K=None, V=None, prev=None,
                        key_padding_mask=None, attn_mask=None,
                        res_attention=True, need_weights=True,
                        compute_dtype=jnp.bfloat16,
                        attn_weights_dtype=jnp.bfloat16,
                        scores_dtype=jnp.float32):
    self_attn = (K is None) and (V is None)
    if K is None:
        K = Q
    if V is None:
        V = Q

    bs, q_len, d_model = Q.shape
    seq_len = K.shape[1]
    n_heads, d_k, d_v = params["n_heads"], params["d_k"], params["d_v"]
    BH = bs * n_heads

    if self_attn:
        q_s, k_s, v_s = project_qkv(Q, *params["W_QKV_scaled"],
                                    n_heads, d_k, d_v, compute_dtype)
    else:
        q_s = project_heads(Q, *params["W_Q_scaled"], n_heads, d_k, compute_dtype)
        k_s = project_heads(K, *params["W_K"], n_heads, d_k, compute_dtype,
                            transpose_out=True)
        v_s = project_heads(V, *params["W_V"], n_heads, d_v, compute_dtype)

    # Masks as small additive biases (no [bs,h,q,s] zero tensor is ever materialized).
    # TODO(synk): only 2D (q,s)-style attn_mask is supported (per-batch/head 3D masks are not).
    attn_mask_add = None
    if attn_mask is not None:
        am = jnp.asarray(attn_mask).reshape(-1, seq_len)[-q_len:, :]
        if am.dtype == jnp.bool_:
            attn_mask_add = jnp.where(am, NEG_INF, 0.0).astype(jnp.float32)
        else:
            attn_mask_add = am.astype(jnp.float32)
    kpm_add = None
    if key_padding_mask is not None:
        kpm = jnp.where(key_padding_mask.reshape(bs, 1, 1, seq_len), NEG_INF, 0.0
                        ).astype(jnp.float32)
        kpm_add = jnp.broadcast_to(kpm, (bs, n_heads, 1, seq_len)
                                   ).reshape(BH, 1, seq_len)
    # prev is passed in its native dtype (cast happens in-kernel during the add).
    prev_r = None if prev is None else prev.reshape(BH, q_len, seq_len)

    ctx, attn_w, scores = sdpa(q_s, k_s, v_s, prev_r, attn_mask_add, kpm_add,
                               need_weights, res_attention,
                               compute_dtype, attn_weights_dtype, scores_dtype)

    out = out_projection(ctx, *params["W_O"], n_heads, Q.dtype, compute_dtype)
    # attn_dropout / proj_dropout are identity in eval mode.

    attn_weights = None if attn_w is None else attn_w.reshape(bs, n_heads, q_len, seq_len)
    if res_attention:
        attn_scores = scores.reshape(bs, n_heads, q_len, seq_len)
        return out, attn_weights, attn_scores
    return out, attn_weights


# ---------------------------------------------------------------------------
# Pure-JAX reference (f32) for a correctness sanity check.
# ---------------------------------------------------------------------------
def reference_mha(params, Q, prev=None):
    bs, q_len, d_model = Q.shape
    n_heads, d_k, d_v = params["n_heads"], params["d_k"], params["d_v"]
    q = (Q @ params["W_Q"][0] + params["W_Q"][1]).reshape(bs, q_len, n_heads, d_k
                                                          ).transpose(0, 2, 1, 3)
    k = (Q @ params["W_K"][0] + params["W_K"][1]).reshape(bs, q_len, n_heads, d_k
                                                          ).transpose(0, 2, 3, 1)
    v = (Q @ params["W_V"][0] + params["W_V"][1]).reshape(bs, q_len, n_heads, d_v
                                                          ).transpose(0, 2, 1, 3)
    scores = jnp.einsum("bhqd,bhds->bhqs", q, k) * params["scale"]
    if prev is not None:
        scores = scores + prev
    attn = jax.nn.softmax(scores, axis=-1)
    ctx = jnp.einsum("bhqs,bhsd->bhqd", attn, v)
    ctx = ctx.transpose(0, 2, 1, 3).reshape(bs, q_len, n_heads * d_v)
    out = ctx @ params["W_O"][0] + params["W_O"][1]
    return out, attn, scores


def _max_err(a, b):
    return float(jnp.max(jnp.abs(a.astype(jnp.float32) - b.astype(jnp.float32))))


if __name__ == "__main__":
    bs, seq_len, d_model, n_heads = 2, 8, 32, 4

    key = jax.random.PRNGKey(0)
    k_param, k_q, k_prev, k_kv = jax.random.split(key, 4)

    params = init_params(k_param, d_model, n_heads)

    Q = jax.random.normal(k_q, (bs, seq_len, d_model), jnp.float32)
    prev = 0.1 * jax.random.normal(k_prev, (bs, n_heads, seq_len, seq_len), jnp.float32)

    # 1) self-attention with residual-attention input (prev) and scores output.
    out, attn_weights, attn_scores = multihead_attention(params, Q, prev=prev)
    jax.block_until_ready((out, attn_weights, attn_scores))
    assert out.shape == (bs, seq_len, d_model)
    assert attn_weights.shape == (bs, n_heads, seq_len, seq_len)
    assert attn_scores.shape == (bs, n_heads, seq_len, seq_len)

    ref_out, ref_attn, ref_scores = reference_mha(params, Q, prev=prev)
    assert _max_err(out, ref_out) < 0.1
    assert _max_err(attn_weights, ref_attn) < 0.05
    assert _max_err(attn_scores, ref_scores) < 0.1

    # 2) masked variant (bool causal attn_mask + key_padding_mask code paths).
    kpm = jnp.zeros((bs, seq_len), jnp.bool_).at[:, -1].set(True)
    causal = jnp.triu(jnp.ones((seq_len, seq_len), jnp.bool_), k=1)
    out_m, attn_m, scores_m = multihead_attention(params, Q,
                                                  key_padding_mask=kpm,
                                                  attn_mask=causal)
    jax.block_until_ready((out_m, attn_m, scores_m))
    assert out_m.shape == (bs, seq_len, d_model)

    # 3) weights-not-needed / no-residual variant (no [bs,h,q,s] writebacks at all).
    out2, attn2 = multihead_attention(params, Q, res_attention=False, need_weights=False)
    jax.block_until_ready(out2)
    assert out2.shape == (bs, seq_len, d_model)
    assert attn2 is None

    # 4) cross-attention path (K/V != Q, different kv length).
    kv_len = 16
    KV = jax.random.normal(k_kv, (bs, kv_len, d_model), jnp.float32)
    out_x, attn_x, scores_x = multihead_attention(params, Q, K=KV, V=KV)
    jax.block_until_ready((out_x, attn_x, scores_x))
    assert out_x.shape == (bs, seq_len, d_model)
    assert attn_x.shape == (bs, n_heads, seq_len, kv_len)

    print("KERNEL_OK")
</pallas_src>

<mosaic_0001>
module attributes {stable_mosaic.version = 11 : i64} {
  func.func @_proj_qkv_kernel(%arg0: i32, %arg1: i32, %arg2: memref<1x8x32xf32, #tpu.memory_space<vmem>>, %arg3: memref<32x96xbf16, #tpu.memory_space<vmem>>, %arg4: memref<1x96xf32, #tpu.memory_space<vmem>>, %arg5: memref<4x8x8xbf16, #tpu.memory_space<vmem>>, %arg6: memref<4x8x8xbf16, #tpu.memory_space<vmem>>, %arg7: memref<4x8x8xbf16, #tpu.memory_space<vmem>>) attributes {dimension_semantics = [#tpu.dimension_semantics<parallel>, #tpu.dimension_semantics<parallel>], iteration_bounds = array<i64: 2, 1>, scalar_prefetch = 0 : i64, scratch_operands = 0 : i64, tpu.core_type = #tpu.core_type<tc>, window_params = [{transform_indices = @transform_0, window_bounds = array<i64: 1, 8, 32>}, {pipeline_mode = #tpu.pipeline_mode<synchronous>, transform_indices = @transform_1, window_bounds = array<i64: 32, 96>}, {pipeline_mode = #tpu.pipeline_mode<synchronous>, transform_indices = @transform_2, window_bounds = array<i64: 1, 96>}, {transform_indices = @transform_3, window_bounds = array<i64: 4, 8, 8>}, {transform_indices = @transform_4, window_bounds = array<i64: 4, 8, 8>}, {transform_indices = @transform_5, window_bounds = array<i64: 4, 8, 8>}]} {
    %c0 = arith.constant 0 : index
    %c0_0 = arith.constant 0 : index
    %c0_1 = arith.constant 0 : index
    %0 = vector.load %arg2[%c0, %c0_0, %c0_1] : memref<1x8x32xf32, #tpu.memory_space<vmem>>, vector<1x8x32xf32>
    %1 = vector.shape_cast %0 : vector<1x8x32xf32> to vector<8x32xf32>
    %2 = arith.truncf %1 : vector<8x32xf32> to vector<8x32xbf16>
    %c0_2 = arith.constant 0 : index
    %c0_3 = arith.constant 0 : index
    %3 = vector.load %arg3[%c0_2, %c0_3] : memref<32x96xbf16, #tpu.memory_space<vmem>>, vector<32x96xbf16>
    %cst = arith.constant dense<0.000000e+00> : vector<8x96xf32>
    %4 = tpu.matmul %2, %3, %cst {dimension_numbers = #tpu.dot_dimension_numbers<[1], [0], [0], [1], [0, 0, 1, 1], [], []>} : vector<8x32xbf16>, vector<32x96xbf16>, vector<8x96xf32> -> vector<8x96xf32>
    %c0_4 = arith.constant 0 : index
    %c0_5 = arith.constant 0 : index
    %5 = vector.load %arg4[%c0_4, %c0_5] : memref<1x96xf32, #tpu.memory_space<vmem>>, vector<1x96xf32>
    %6 = vector.broadcast %5 : vector<1x96xf32> to vector<8x96xf32>
    %7 = arith.addf %4, %6 : vector<8x96xf32>
    %8 = vector.extract_strided_slice %7 {offsets = [0, 32], sizes = [8, 32], strides = [1, 1]} : vector<8x96xf32> to vector<8x32xf32>
    %9 = tpu.transpose %8, [1, 0] : vector<8x32xf32> -> vector<32x8xf32>
    %10 = vector.extract_strided_slice %7 {offsets = [0, 0], sizes = [8, 8], strides = [1, 1]} : vector<8x96xf32> to vector<8x8xf32>
    %11 = arith.truncf %10 : vector<8x8xf32> to vector<8x8xbf16>
    %c0_6 = arith.constant 0 : index
    %c0_7 = arith.constant 0 : index
    %c0_8 = arith.constant 0 : index
    %12 = vector.load %arg5[%c0_6, %c0_7, %c0_8] : memref<4x8x8xbf16, #tpu.memory_space<vmem>>, vector<1x8x8xbf16>
    %13 = vector.shape_cast %12 : vector<1x8x8xbf16> to vector<8x8xbf16>
    %14 = vector.shape_cast %11 : vector<8x8xbf16> to vector<1x8x8xbf16>
    tpu.vector_store %arg5[%c0_6, %c0_7, %c0_8], %14 {strides = array<i32>} : memref<4x8x8xbf16, #tpu.memory_space<vmem>>, vector<1x8x8xbf16>,
    %15 = vector.extract_strided_slice %9 {offsets = [0, 0], sizes = [8, 8], strides = [1, 1]} : vector<32x8xf32> to vector<8x8xf32>
    %16 = arith.truncf %15 : vector<8x8xf32> to vector<8x8xbf16>
    %c0_9 = arith.constant 0 : index
    %c0_10 = arith.constant 0 : index
    %c0_11 = arith.constant 0 : index
    %17 = vector.load %arg6[%c0_9, %c0_10, %c0_11] : memref<4x8x8xbf16, #tpu.memory_space<vmem>>, vector<1x8x8xbf16>
    %18 = vector.shape_cast %17 : vector<1x8x8xbf16> to vector<8x8xbf16>
    %19 = vector.shape_cast %16 : vector<8x8xbf16> to vector<1x8x8xbf16>
    tpu.vector_store %arg6[%c0_9, %c0_10, %c0_11], %19 {strides = array<i32>} : memref<4x8x8xbf16, #tpu.memory_space<vmem>>, vector<1x8x8xbf16>,
    %20 = vector.extract_strided_slice %7 {offsets = [0, 64], sizes = [8, 8], strides = [1, 1]} : vector<8x96xf32> to vector<8x8xf32>
    %21 = arith.truncf %20 : vector<8x8xf32> to vector<8x8xbf16>
    %c0_12 = arith.constant 0 : index
    %c0_13 = arith.constant 0 : index
    %c0_14 = arith.constant 0 : index
    %22 = vector.load %arg7[%c0_12, %c0_13, %c0_14] : memref<4x8x8xbf16, #tpu.memory_space<vmem>>, vector<1x8x8xbf16>
    %23 = vector.shape_cast %22 : vector<1x8x8xbf16> to vector<8x8xbf16>
    %24 = vector.shape_cast %21 : vector<8x8xbf16> to vector<1x8x8xbf16>
    tpu.vector_store %arg7[%c0_12, %c0_13, %c0_14], %24 {strides = array<i32>} : memref<4x8x8xbf16, #tpu.memory_space<vmem>>, vector<1x8x8xbf16>,
    %25 = vector.extract_strided_slice %7 {offsets = [0, 8], sizes = [8, 8], strides = [1, 1]} : vector<8x96xf32> to vector<8x8xf32>
    %26 = arith.truncf %25 : vector<8x8xf32> to vector<8x8xbf16>
    %c1 = arith.constant 1 : index
    %c0_15 = arith.constant 0 : index
    %c0_16 = arith.constant 0 : index
    %27 = vector.load %arg5[%c1, %c0_15, %c0_16] : memref<4x8x8xbf16, #tpu.memory_space<vmem>>, vector<1x8x8xbf16>
    %28 = vector.shape_cast %27 : vector<1x8x8xbf16> to vector<8x8xbf16>
    %29 = vector.shape_cast %26 : vector<8x8xbf16> to vector<1x8x8xbf16>
    tpu.vector_store %arg5[%c1, %c0_15, %c0_16], %29 {strides = array<i32>} : memref<4x8x8xbf16, #tpu.memory_space<vmem>>, vector<1x8x8xbf16>,
    %30 = vector.extract_strided_slice %9 {offsets = [8, 0], sizes = [8, 8], strides = [1, 1]} : vector<32x8xf32> to vector<8x8xf32>
    %31 = arith.truncf %30 : vector<8x8xf32> to vector<8x8xbf16>
    %c1_17 = arith.constant 1 : index
    %c0_18 = arith.constant 0 : index
    %c0_19 = arith.constant 0 : index
    %32 = vector.load %arg6[%c1_17, %c0_18, %c0_19] : memref<4x8x8xbf16, #tpu.memory_space<vmem>>, vector<1x8x8xbf16>
    %33 = vector.shape_cast %32 : vector<1x8x8xbf16> to vector<8x8xbf16>
    %34 = vector.shape_cast %31 : vector<8x8xbf16> to vector<1x8x8xbf16>
    tpu.vector_store %arg6[%c1_17, %c0_18, %c0_19], %34 {strides = array<i32>} : memref<4x8x8xbf16, #tpu.memory_space<vmem>>, vector<1x8x8xbf16>,
    %35 = vector.extract_strided_slice %7 {offsets = [0, 72], sizes = [8, 8], strides = [1, 1]} : vector<8x96xf32> to vector<8x8xf32>
    %36 = arith.truncf %35 : vector<8x8xf32> to vector<8x8xbf16>
    %c1_20 = arith.constant 1 : index
    %c0_21 = arith.constant 0 : index
    %c0_22 = arith.constant 0 : index
    %37 = vector.load %arg7[%c1_20, %c0_21, %c0_22] : memref<4x8x8xbf16, #tpu.memory_space<vmem>>, vector<1x8x8xbf16>
    %38 = vector.shape_cast %37 : vector<1x8x8xbf16> to vector<8x8xbf16>
    %39 = vector.shape_cast %36 : vector<8x8xbf16> to vector<1x8x8xbf16>
    tpu.vector_store %arg7[%c1_20, %c0_21, %c0_22], %39 {strides = array<i32>} : memref<4x8x8xbf16, #tpu.memory_space<vmem>>, vector<1x8x8xbf16>,
    %40 = vector.extract_strided_slice %7 {offsets = [0, 16], sizes = [8, 8], strides = [1, 1]} : vector<8x96xf32> to vector<8x8xf32>
    %41 = arith.truncf %40 : vector<8x8xf32> to vector<8x8xbf16>
    %c2 = arith.constant 2 : index
    %c0_23 = arith.constant 0 : index
    %c0_24 = arith.constant 0 : index
    %42 = vector.load %arg5[%c2, %c0_23, %c0_24] : memref<4x8x8xbf16, #tpu.memory_space<vmem>>, vector<1x8x8xbf16>
    %43 = vector.shape_cast %42 : vector<1x8x8xbf16> to vector<8x8xbf16>
    %44 = vector.shape_cast %41 : vector<8x8xbf16> to vector<1x8x8xbf16>
    tpu.vector_store %arg5[%c2, %c0_23, %c0_24], %44 {strides = array<i32>} : memref<4x8x8xbf16, #tpu.memory_space<vmem>>, vector<1x8x8xbf16>,
    %45 = vector.extract_strided_slice %9 {offsets = [16, 0], sizes = [8, 8], strides = [1, 1]} : vector<32x8xf32> to vector<8x8xf32>
    %46 = arith.truncf %45 : vector<8x8xf32> to vector<8x8xbf16>
    %c2_25 = arith.constant 2 : index
    %c0_26 = arith.constant 0 : index
    %c0_27 = arith.constant 0 : index
    %47 = vector.load %arg6[%c2_25, %c0_26, %c0_27] : memref<4x8x8xbf16, #tpu.memory_space<vmem>>, vector<1x8x8xbf16>
    %48 = vector.shape_cast %47 : vector<1x8x8xbf16> to vector<8x8xbf16>
    %49 = vector.shape_cast %46 : vector<8x8xbf16> to vector<1x8x8xbf16>
    tpu.vector_store %arg6[%c2_25, %c0_26, %c0_27], %49 {strides = array<i32>} : memref<4x8x8xbf16, #tpu.memory_space<vmem>>, vector<1x8x8xbf16>,
    %50 = vector.extract_strided_slice %7 {offsets = [0, 80], sizes = [8, 8], strides = [1, 1]} : vector<8x96xf32> to vector<8x8xf32>
    %51 = arith.truncf %50 : vector<8x8xf32> to vector<8x8xbf16>
    %c2_28 = arith.constant 2 : index
    %c0_29 = arith.constant 0 : index
    %c0_30 = arith.constant 0 : index
    %52 = vector.load %arg7[%c2_28, %c0_29, %c0_30] : memref<4x8x8xbf16, #tpu.memory_space<vmem>>, vector<1x8x8xbf16>
    %53 = vector.shape_cast %52 : vector<1x8x8xbf16> to vector<8x8xbf16>
    %54 = vector.shape_cast %51 : vector<8x8xbf16> to vector<1x8x8xbf16>
    tpu.vector_store %arg7[%c2_28, %c0_29, %c0_30], %54 {strides = array<i32>} : memref<4x8x8xbf16, #tpu.memory_space<vmem>>, vector<1x8x8xbf16>,
    %55 = vector.extract_strided_slice %7 {offsets = [0, 24], sizes = [8, 8], strides = [1, 1]} : vector<8x96xf32> to vector<8x8xf32>
    %56 = arith.truncf %55 : vector<8x8xf32> to vector<8x8xbf16>
    %c3 = arith.constant 3 : index
    %c0_31 = arith.constant 0 : index
    %c0_32 = arith.constant 0 : index
    %57 = vector.load %arg5[%c3, %c0_31, %c0_32] : memref<4x8x8xbf16, #tpu.memory_space<vmem>>, vector<1x8x8xbf16>
    %58 = vector.shape_cast %57 : vector<1x8x8xbf16> to vector<8x8xbf16>
    %59 = vector.shape_cast %56 : vector<8x8xbf16> to vector<1x8x8xbf16>
    tpu.vector_store %arg5[%c3, %c0_31, %c0_32], %59 {strides = array<i32>} : memref<4x8x8xbf16, #tpu.memory_space<vmem>>, vector<1x8x8xbf16>,
    %60 = vector.extract_strided_slice %9 {offsets = [24, 0], sizes = [8, 8], strides = [1, 1]} : vector<32x8xf32> to vector<8x8xf32>
    %61 = arith.truncf %60 : vector<8x8xf32> to vector<8x8xbf16>
    %c3_33 = arith.constant 3 : index
    %c0_34 = arith.constant 0 : index
    %c0_35 = arith.constant 0 : index
    %62 = vector.load %arg6[%c3_33, %c0_34, %c0_35] : memref<4x8x8xbf16, #tpu.memory_space<vmem>>, vector<1x8x8xbf16>
    %63 = vector.shape_cast %62 : vector<1x8x8xbf16> to vector<8x8xbf16>
    %64 = vector.shape_cast %61 : vector<8x8xbf16> to vector<1x8x8xbf16>
    tpu.vector_store %arg6[%c3_33, %c0_34, %c0_35], %64 {strides = array<i32>} : memref<4x8x8xbf16, #tpu.memory_space<vmem>>, vector<1x8x8xbf16>,
    %65 = vector.extract_strided_slice %7 {offsets = [0, 88], sizes = [8, 8], strides = [1, 1]} : vector<8x96xf32> to vector<8x8xf32>
    %66 = arith.truncf %65 : vector<8x8xf32> to vector<8x8xbf16>
    %c3_36 = arith.constant 3 : index
    %c0_37 = arith.constant 0 : index
    %c0_38 = arith.constant 0 : index
    %67 = vector.load %arg7[%c3_36, %c0_37, %c0_38] : memref<4x8x8xbf16, #tpu.memory_space<vmem>>, vector<1x8x8xbf16>
    %68 = vector.shape_cast %67 : vector<1x8x8xbf16> to vector<8x8xbf16>
    %69 = vector.shape_cast %66 : vector<8x8xbf16> to vector<1x8x8xbf16>
    tpu.vector_store %arg7[%c3_36, %c0_37, %c0_38], %69 {strides = array<i32>} : memref<4x8x8xbf16, #tpu.memory_space<vmem>>, vector<1x8x8xbf16>,
    return
  }
  func.func @transform_0(%arg0: i32, %arg1: i32) -> (i32, i32, i32) {
    %c0_i32 = arith.constant 0 : i32
    %c0_i32_0 = arith.constant 0 : i32
    return %arg0, %arg1, %c0_i32 : i32, i32, i32
  }
  func.func @transform_1(%arg0: i32, %arg1: i32) -> (i32, i32) {
    %c0_i32 = arith.constant 0 : i32
    %c0_i32_0 = arith.constant 0 : i32
    %c0_i32_1 = arith.constant 0 : i32
    return %c0_i32, %c0_i32_0 : i32, i32
  }
  func.func @transform_2(%arg0: i32, %arg1: i32) -> (i32, i32) {
    %c0_i32 = arith.constant 0 : i32
    %c0_i32_0 = arith.constant 0 : i32
    %c0_i32_1 = arith.constant 0 : i32
    return %c0_i32, %c0_i32_0 : i32, i32
  }
  func.func @transform_3(%arg0: i32, %arg1: i32) -> (i32, i32, i32) {
    %c0_i32 = arith.constant 0 : i32
    %c0_i32_0 = arith.constant 0 : i32
    return %arg0, %arg1, %c0_i32 : i32, i32, i32
  }
  func.func @transform_4(%arg0: i32, %arg1: i32) -> (i32, i32, i32) {
    %c0_i32 = arith.constant 0 : i32
    %c0_i32_0 = arith.constant 0 : i32
    return %arg0, %c0_i32, %arg1 : i32, i32, i32
  }
  func.func @transform_5(%arg0: i32, %arg1: i32) -> (i32, i32, i32) {
    %c0_i32 = arith.constant 0 : i32
    %c0_i32_0 = arith.constant 0 : i32
    return %arg0, %arg1, %c0_i32 : i32, i32, i32
  }
}

</mosaic_0001>

<llo_original>
// kernel: tpu_custom_call.1
$region0: #{tpu_custom_call.1}
  #allocation0 [shape = 'u32[]', space=smem, size = 0x4, offset = 0x4, fixed_abs, tag = 'smem constant byte address 0x4 - core index']
  #allocation1 [shape = 'u32[144,128]{1,0:T(1,128)}', space=vmem, size = 0x12000, scoped, tag = 'internal scratch']
  %s0 = inlined_call_operand.hbm [shape: f32[2,8,32], index: 0, kind: input, shape index: {}]
  %s1 = inlined_call_operand.hbm [shape: bf16[32,96], index: 1, kind: input, shape index: {}]
  %s2 = inlined_call_operand.vmem [shape: f32[1,96], index: 2, kind: input, shape index: {}]
  %s3 = inlined_call_operand.hbm [shape: bf16[8,8,8], index: 3, kind: output, shape index: {0}]
  %s4 = inlined_call_operand.hbm [shape: bf16[8,8,8], index: 4, kind: output, shape index: {1}]
  %s5 = inlined_call_operand.hbm [shape: bf16[8,8,8], index: 5, kind: output, shape index: {2}]
  %6 = xla_tuple %s3, %s4, %s5
  %s7 = sld [smem:[#allocation0]]
  $region69: #{tpu_custom_call.1} parent=0
    _
  %s9 = ssub.s32 1, %s7
  %s10 = scalar_select 0, %s9, %s7
  $region1: #{tpu_custom_call.1} parent=0
    #allocation2 [shape = 'u8[8192]{0}', space=vmem, size = 0x2000, scoped, tag = 'input window, operand 0']
    #allocation3 [shape = 's32[2]{0}', space=sflag, size = 0x8, scoped, tag = 'scoped memory for tpu_custom_call.1']
    #allocation4 [shape = 's32[2]{0}', space=sflag, size = 0x8, scoped, tag = 'scoped memory for tpu_custom_call.1']
    #allocation5 [shape = 'u8[8192]{0}', space=vmem, size = 0x2000, scoped, tag = 'input window, operand 1, single buffered']
    #allocation6 [shape = 's32[1]{0}', space=sflag, size = 0x4, scoped, tag = 'scoped memory for tpu_custom_call.1']
    #allocation7 [shape = 'u8[16384]{0}', space=vmem, size = 0x4000, scoped, tag = 'output window, operand 0']
    #allocation8 [shape = 'u8[16384]{0}', space=vmem, size = 0x4000, scoped, tag = 'output window, operand 1']
    #allocation9 [shape = 's32[2]{0}', space=sflag, size = 0x8, scoped, tag = 'scoped memory for tpu_custom_call.1']
    #allocation10 [shape = 'u8[16384]{0}', space=vmem, size = 0x4000, scoped, tag = 'output window, operand 2']
    %11 = vsyncpa [#allocation3], 0
    %s12 = scalar_lea.sflag [#allocation3], 1
    %13 = vsyncpa %s12, 0
    %14 = vsyncpa [#allocation6], 0
    %15 = vsyncpa [#allocation4], 0
    %s16 = scalar_lea.sflag [#allocation4], 1
    %17 = vsyncpa %s16, 0
    %18 = vsyncpa [#allocation9], 0
    %s19 = scalar_lea.sflag [#allocation9], 1
    %20 = vsyncpa %s19, 0
    loop: start=0, step=1, limit=4
    $region2: #{tpu_custom_call.1} parent=1 // loop_pre_header
      _
    $region3: #{tpu_custom_call.1} parent=1 // loop_header
      %s22 = sphi 0, %s26
      %p23 = scmp.ge.s32.totalorder %s22, 4
      %s29 = sphi 0, %s41
      %s30 = sphi 0, %s37
      %s31 = sphi 0, %s29
      %s32 = sphi 0, %s30
      %s33 = sphi 0, %s31
      %s34 = sphi 0, %s32
      %s46 = sphi 0, %s48
      %s49 = sphi 0, %s46
      %s50 = sphi 0, %s49
      %s66 = sphi 0, %s50
      %s70 = sphi 0, %s70
      %s72 = sphi 0, %s70
      %s73 = sphi 0, %s72
      %s87 = sphi 0, %s73
      %s91 = sphi 0, %s91
      %s93 = sphi 0, %s91
      %s94 = sphi 0, %s93
      %s108 = sphi 0, %s94
      %s116 = sphi 0, %s118
      %s119 = sphi 0, %s116
      %s120 = sphi 0, %s119
      %s136 = sphi 0, %s120
      %s144 = sphi 0, %s146
      %s147 = sphi 0, %s144
      %s148 = sphi 0, %s147
      %s164 = sphi 0, %s148
      %s172 = sphi 0, %s174
      %s175 = sphi 0, %s172
      %s176 = sphi 0, %s175
      %s192 = sphi 0, %s176
    $region4: #{tpu_custom_call.1} parent=1 // loop_header_branch
      %25 = sbr.rel (%p23) target = $region8
    $region5: #{tpu_custom_call.1} parent=1 // loop_body
      %s27 = ssub.s32 %s22, 1
      %s28 = ssub.s32 %s22, 2
      %s35 = sadd.s32 1, %s30
      %p36 = scmp.ge.s32.totalorder %s35, 1
      %s37 = scalar_select %p36, 0, %s35
      %s38 = sadd.s32 1, %s29
      %s39 = scalar_select %p36, %s38, %s29
      %p40 = scmp.ge.s32.totalorder %s39, 2
      %s41 = scalar_select %p40, 0, %s39
      %s42 = ssub.s32 %s29, %s41
      %s43 = ssub.s32 %s30, %s37
      %s44 = sor.u32 %s42, %s43
      %p45 = scmp.eq.s32.totalorder %s44, 0
      %s47 = sadd.s32 %s46, 1
      %s48 = scalar_select %p45, %s46, %s47
      %p51 = pneg %p45
      %p52 = scmp.eq.s32.totalorder %s22, 1
      %p53 = por %p51, %p52
      %p54 = scmp.ne.s32.totalorder %s46, %s49
      %p55 = scmp.eq.s32.totalorder %s22, 0
      %p56 = por %p54, %p55
      %p57 = scmp.ne.s32.totalorder %s46, %s49
      %p58 = scmp.eq.s32.totalorder %s27, 1
      %p59 = por %p57, %p58
      %p60 = scmp.ne.s32.totalorder %s49, %s50
      %p61 = scmp.eq.s32.totalorder %s27, 0
      %p62 = por %p60, %p61
      %p63 = scmp.ne.s32.totalorder %s49, %s50
      %p64 = scmp.eq.s32.totalorder %s28, 1
      %p65 = por %p63, %p64
      %p67 = scmp.ne.s32.totalorder %s50, %s66
      %p68 = scmp.eq.s32.totalorder %s28, 0
      %p69 = por %p67, %p68
      %s71 = sadd.s32 %s70, 1
      %p74 = scmp.eq.s32.totalorder %s22, 1
      %p75 = scmp.ne.s32.totalorder %s70, %s72
      %p76 = scmp.eq.s32.totalorder %s22, 0
      %p77 = por %p75, %p76
      %p78 = scmp.ne.s32.totalorder %s70, %s72
      %p79 = scmp.eq.s32.totalorder %s27, 1
      %p80 = por %p78, %p79
      %p81 = scmp.ne.s32.totalorder %s72, %s73
      %p82 = scmp.eq.s32.totalorder %s27, 0
      %p83 = por %p81, %p82
      %p84 = scmp.ne.s32.totalorder %s72, %s73
      %p85 = scmp.eq.s32.totalorder %s28, 1
      %p86 = por %p84, %p85
      %p88 = scmp.ne.s32.totalorder %s73, %s87
      %p89 = scmp.eq.s32.totalorder %s28, 0
      %p90 = por %p88, %p89
      %s92 = sadd.s32 %s91, 1
      %p95 = scmp.eq.s32.totalorder %s22, 1
      %p96 = scmp.ne.s32.totalorder %s91, %s93
      %p97 = scmp.eq.s32.totalorder %s22, 0
      %p98 = por %p96, %p97
      %p99 = scmp.ne.s32.totalorder %s91, %s93
      %p100 = scmp.eq.s32.totalorder %s27, 1
      %p101 = por %p99, %p100
      %p102 = scmp.ne.s32.totalorder %s93, %s94
      %p103 = scmp.eq.s32.totalorder %s27, 0
      %p104 = por %p102, %p103
      %p105 = scmp.ne.s32.totalorder %s93, %s94
      %p106 = scmp.eq.s32.totalorder %s28, 1
      %p107 = por %p105, %p106
      %p109 = scmp.ne.s32.totalorder %s94, %s108
      %p110 = scmp.eq.s32.totalorder %s28, 0
      %p111 = por %p109, %p110
      %s112 = ssub.s32 %s29, %s41
      %s113 = ssub.s32 %s30, %s37
      %s114 = sor.u32 %s112, %s113
      %p115 = scmp.eq.s32.totalorder %s114, 0
      %s117 = sadd.s32 %s116, 1
      %s118 = scalar_select %p115, %s116, %s117
      %p121 = pneg %p115
      %p122 = scmp.eq.s32.totalorder %s22, 1
      %p123 = por %p121, %p122
      %p124 = scmp.ne.s32.totalorder %s116, %s119
      %p125 = scmp.eq.s32.totalorder %s22, 0
      %p126 = por %p124, %p125
      %p127 = scmp.ne.s32.totalorder %s116, %s119
      %p128 = scmp.eq.s32.totalorder %s27, 1
      %p129 = por %p127, %p128
      %p130 = scmp.ne.s32.totalorder %s119, %s120
      %p131 = scmp.eq.s32.totalorder %s27, 0
      %p132 = por %p130, %p131
      %p133 = scmp.ne.s32.totalorder %s119, %s120
      %p134 = scmp.eq.s32.totalorder %s28, 1
      %p135 = por %p133, %p134
      %p137 = scmp.ne.s32.totalorder %s120, %s136
      %p138 = scmp.eq.s32.totalorder %s28, 0
      %p139 = por %p137, %p138
      %s140 = ssub.s32 %s29, %s41
      %s141 = ssub.s32 %s30, %s37
      %s142 = sor.u32 %s140, %s141
      %p143 = scmp.eq.s32.totalorder %s142, 0
      %s145 = sadd.s32 %s144, 1
      %s146 = scalar_select %p143, %s144, %s145
      %p149 = pneg %p143
      %p150 = scmp.eq.s32.totalorder %s22, 1
      %p151 = por %p149, %p150
      %p152 = scmp.ne.s32.totalorder %s144, %s147
      %p153 = scmp.eq.s32.totalorder %s22, 0
      %p154 = por %p152, %p153
      %p155 = scmp.ne.s32.totalorder %s144, %s147
      %p156 = scmp.eq.s32.totalorder %s27, 1
      %p157 = por %p155, %p156
      %p158 = scmp.ne.s32.totalorder %s147, %s148
      %p159 = scmp.eq.s32.totalorder %s27, 0
      %p160 = por %p158, %p159
      %p161 = scmp.ne.s32.totalorder %s147, %s148
      %p162 = scmp.eq.s32.totalorder %s28, 1
      %p163 = por %p161, %p162
      %p165 = scmp.ne.s32.totalorder %s148, %s164
      %p166 = scmp.eq.s32.totalorder %s28, 0
      %p167 = por %p165, %p166
      %s168 = ssub.s32 %s29, %s41
      %s169 = ssub.s32 %s30, %s37
      %s170 = sor.u32 %s168, %s169
      %p171 = scmp.eq.s32.totalorder %s170, 0
      %s173 = sadd.s32 %s172, 1
      %s174 = scalar_select %p171, %s172, %s173
      %p177 = pneg %p171
      %p178 = scmp.eq.s32.totalorder %s22, 1
      %p179 = por %p177, %p178
      %p180 = scmp.ne.s32.totalorder %s172, %s175
      %p181 = scmp.eq.s32.totalorder %s22, 0
      %p182 = por %p180, %p181
      %p183 = scmp.ne.s32.totalorder %s172, %s175
      %p184 = scmp.eq.s32.totalorder %s27, 1
      %p185 = por %p183, %p184
      %p186 = scmp.ne.s32.totalorder %s175, %s176
      %p187 = scmp.eq.s32.totalorder %s27, 0
      %p188 = por %p186, %p187
      %p189 = scmp.ne.s32.totalorder %s175, %s176
      %p190 = scmp.eq.s32.totalorder %s28, 1
      %p191 = por %p189, %p190
      %p193 = scmp.ne.s32.totalorder %s176, %s192
      %p194 = scmp.eq.s32.totalorder %s28, 0
      %p195 = por %p193, %p194
      %p196 = scmp.le.s32.totalorder 1, %s22
      %p197 = scmp.lt.s32.totalorder %s22, 3
      %p198 = pnand %p196, %p197
      %p199 = pneg %p198
      // Predicated region
      $region9: #{tpu_custom_call.1} parent=5 // pred_check
        _
      $region10: #{tpu_custom_call.1} parent=5 // pred_check_branch
        %201 = sbr.rel (%p198) target = $region12
      $region11: #{tpu_custom_call.1} parent=5 // pred_region
        %s202 = ssub.s32 %s22, 1
        // Predicated region
        $region13: #{tpu_custom_call.1} parent=11 // pred_check
          %p203 = pneg %p83
        $region14: #{tpu_custom_call.1} parent=11 // pred_check_branch
          %205 = sbr.rel (%p203) target = $region16
        $region15: #{tpu_custom_call.1} parent=11 // pred_region
          %s207 = ssub.s32 256, 256
          %208 = vsyncadd [#allocation6], %s207
          %s209 = sshll.u32 [#allocation5], 4
          %s210 = int_to_ptr.vmem [resolvable:$true] %s209
          %215 = dma.hbm_to_vmem [thread:$0]  %s1, 256, %s210, [#allocation6], 64, 64, 4
        $region16: #{tpu_custom_call.1} parent=11 // pred_fallthru
          _
        // Predicated region
        $region17: #{tpu_custom_call.1} parent=11 // pred_check
          %p216 = pneg %p104
        $region18: #{tpu_custom_call.1} parent=11 // pred_check_branch
          %218 = sbr.rel (%p216) target = $region20
        $region19: #{tpu_custom_call.1} parent=11 // pred_region
          _
        $region20: #{tpu_custom_call.1} parent=11 // pred_fallthru
          _
      $region12: #{tpu_custom_call.1} parent=5 // pred_fallthru
        _
      %p219 = scmp.lt.s32.totalorder %s22, 2
      // Predicated region
      $region21: #{tpu_custom_call.1} parent=5 // pred_check
        %p220 = pneg %p219
      $region22: #{tpu_custom_call.1} parent=5 // pred_check_branch
        %222 = sbr.rel (%p220) target = $region24
      $region23: #{tpu_custom_call.1} parent=5 // pred_region
        // Predicated region
        $region25: #{tpu_custom_call.1} parent=23 // pred_check
          %p223 = pneg %p56
        $region26: #{tpu_custom_call.1} parent=23 // pred_check_branch
          %225 = sbr.rel (%p223) target = $region28
        $region27: #{tpu_custom_call.1} parent=23 // pred_region
          %s226 = sand.u32 %s46, 1
          %s227 = scalar_lea.sflag [#allocation3], %s226
          %s228 = sand.u32 %s46, 1
          %s229 = smul.addr %s228, 8
          %s230 = scalar_lea.vmem [#allocation2], %s229
          %s232 = ssub.s32 128, 128
          %233 = vsyncadd %s227, %s232
          %s234 = sadd.s32 %s30, %s29
          %s235 = smul.addr %s234, 128
          %s236 = scalar_lea.hbm %s0, %s235
          %s238 = sshll.u32 %s230, 4
          %s239 = int_to_ptr.vmem [resolvable:$true] %s238
          %241 = dma.hbm_to_vmem [thread:$0]  %s236, 128, %s239, %s227
        $region28: #{tpu_custom_call.1} parent=23 // pred_fallthru
          _
      $region24: #{tpu_custom_call.1} parent=5 // pred_fallthru
        _
      %p242 = scmp.le.s32.totalorder 1, %s22
      %p243 = scmp.lt.s32.totalorder %s22, 3
      %p244 = pnand %p242, %p243
      %p245 = pneg %p244
      // Predicated region
      $region29: #{tpu_custom_call.1} parent=5 // pred_check
        _
      $region30: #{tpu_custom_call.1} parent=5 // pred_check_branch
        %247 = sbr.rel (%p244) target = $region32
      $region31: #{tpu_custom_call.1} parent=5 // pred_region
        %s248 = ssub.s32 %s22, 1
        %s249 = sand.u32 %s49, 1
        %s250 = scalar_lea.sflag [#allocation3], %s249
        %s251 = sand.u32 %s49, 1
        %s252 = smul.addr %s251, 8
        %s253 = scalar_lea.vmem [#allocation2], %s252
        // Predicated region
        $region33: #{tpu_custom_call.1} parent=31 // pred_check
          %p254 = pneg %p62
        $region34: #{tpu_custom_call.1} parent=31 // pred_check_branch
          %256 = sbr.rel (%p254) target = $region36
        $region35: #{tpu_custom_call.1} parent=31 // pred_region
          %257 = dma.done %s250, 128
        $region36: #{tpu_custom_call.1} parent=31 // pred_fallthru
          _
        // Predicated region
        $region37: #{tpu_custom_call.1} parent=31 // pred_check
          %p258 = pneg %p83
        $region38: #{tpu_custom_call.1} parent=31 // pred_check_branch
          %260 = sbr.rel (%p258) target = $region40
        $region39: #{tpu_custom_call.1} parent=31 // pred_region
          %261 = dma.done [#allocation6], 256
        $region40: #{tpu_custom_call.1} parent=31 // pred_fallthru
          _
        %s262 = sand.u32 %s49, 1
        %s263 = scalar_lea.sflag [#allocation3], %s262
        %s264 = sand.u32 %s49, 1
        %s265 = smul.addr %s264, 8
        %s266 = scalar_lea.vmem [#allocation2], %s265
        %p267 = pneg %p62
        %p268 = pneg %p59
        %p269 = pneg %p83
        %p270 = pneg %p80
        %p271 = pneg %p104
        %p272 = pneg %p101
        %p273 = pneg %p132
        %p274 = pneg %p129
        %s275 = sand.u32 %s119, 1
        %s276 = scalar_lea.sflag [#allocation4], %s275
        %s277 = sand.u32 %s119, 1
        %s278 = smul.addr %s277, 16
        %s279 = scalar_lea.vmem [#allocation7], %s278
        %p280 = pneg %p160
        %p281 = pneg %p157
        %s282 = sand.u32 %s27, 1
        %s283 = scalar_lea.sflag [#allocation9], %s282
        %s284 = sand.u32 %s147, 1
        %s285 = smul.addr %s284, 16
        %s286 = scalar_lea.vmem [#allocation8], %s285
        %p287 = pneg %p188
        %p288 = pneg %p185
        %s289 = sand.u32 %s27, 1
        %s290 = scalar_lea.sflag [#allocation9], %s289
        %s291 = sand.u32 %s175, 1
        %s292 = smul.addr %s291, 16
        %s293 = scalar_lea.vmem [#allocation10], %s292
        %s294 = smul.u32 4, %s31
        %s295 = smul.u32 4, %s31
        %s296 = smul.u32 4, %s31
        %v298 = vld [vmem:[%s253] sm:$0xff]
        %v299 = vpack.c.bf16 %v298, %v298
        %v300 = vld [vmem:[#allocation5] sm:$0xf]
        %v301 = vld [vmem:[#allocation5 + $0x4] sm:$0xf]
        %v302 = vld [vmem:[#allocation5 + $0x8] sm:$0xf]
        %v303 = vld [vmem:[#allocation5 + $0xc] sm:$0xf]
        %v304 = vld [vmem:[%s2] sm:$0x1]
        %v306 = vlaneseq
        %v307 = vshrl.u32 %v306, 7
        %v308 = vsub.s32 0, %v307
        %v309 = vrot.slane %v304, %v308
        %v315 = vunpack.c.l.b16 %v300
        %v316 = vunpack.c.l.b16 %v301
        %v317 = vunpack.c.l.b16 %v302
        %v318 = vunpack.c.l.b16 %v303
        %v319 = vpack.c.b16 %v316, %v315
        %v320 = vpack.c.b16 %v318, %v317
        %vm323 = vcmask 261120
        %v325 = vsel %vm323, %v299, 0
        %327 = vmatprep.subr.bf16.mxu0 0
        %328 = vmatpush1.bf16.msra.mxu0 %v319
        %329 = vmatprep.subr.bf16.mxu0 0
        %330 = vmatpush1.bf16.msra.mxu0 %v320
        %331 = vmatprep.subr.bf16.mxu0 0
        %332 = vmatpush1.bf16.msra.mxu0 0
        %333 = vmatprep.subr.bf16.mxu0 0
        %334 = vmatpush1.bf16.msra.mxu0 0
        %335 = vmatprep.subr.bf16.mxu0 0
        %336 = vmatpush1.bf16.msra.mxu0 0
        %337 = vmatprep.subr.bf16.mxu0 0
        %338 = vmatpush1.bf16.msra.mxu0 0
        %339 = vmatprep.subr.bf16.mxu0 0
        %340 = vmatpush1.bf16.msra.mxu0 0
        %341 = vmatprep.subr.bf16.mxu0 0
        %342 = vmatpush1.bf16.msra.mxu0 0
        %343 = vmatprep.subr.bf16.mxu0 0
        %344 = vmatpush1.bf16.msra.mxu0 0
        %345 = vmatprep.subr.bf16.mxu0 0
        %346 = vmatpush1.bf16.msra.mxu0 0
        %347 = vmatprep.subr.bf16.mxu0 0
        %348 = vmatpush1.bf16.msra.mxu0 0
        %349 = vmatprep.subr.bf16.mxu0 0
        %350 = vmatpush1.bf16.msra.mxu0 0
        %351 = vmatprep.subr.bf16.mxu0 0
        %352 = vmatpush1.bf16.msra.mxu0 0
        %353 = vmatprep.subr.bf16.mxu0 0
        %354 = vmatpush1.bf16.msra.mxu0 0
        %355 = vmatprep.subr.bf16.mxu0 0
        %356 = vmatpush1.bf16.msra.mxu0 0
        %357 = vmatprep.subr.bf16.mxu0 0
        %358 = vmatpush1.bf16.msra.mxu0 0
        %359 = vmatprep.mubr.bf16.mxu0 0
        %360 = vmatmul.mubr.bf16.gmra.mrb[0].mxu0 %v325
        %v361 = vpop.f32.mrb[0].mxu0
        %v362 = vadd.f32 %v309, %v361
        %v363 = vpop.f32.mrb[0].mxu0
        %v364 = vpop.f32.mrb[0].mxu0
        %v365 = vpop.f32.mrb[0].mxu0
        %366 = vdwg.mxu0
        %368 = vrot.lane.b32.xlu0 %v362, 96
        %v369 = vpop.permute.xlu0 %368
        %371 = vxpose.xlu0.b32.start [1/16] %v369, 128
        %372 = vxpose.xlu0.b32.cont [2/16] 0.0, 128
        %373 = vxpose.xlu0.b32.cont [3/16] 0.0, 128
        %374 = vxpose.xlu0.b32.cont [4/16] 0.0, 128
        %375 = vxpose.xlu0.b32.cont [5/16] 0.0, 128
        %376 = vxpose.xlu0.b32.cont [6/16] 0.0, 128
        %377 = vxpose.xlu0.b32.cont [7/16] 0.0, 128
        %378 = vxpose.xlu0.b32.cont [8/16] 0.0, 128
        %379 = vxpose.xlu0.b32.cont [9/16] 0.0, 128
        %380 = vxpose.xlu0.b32.cont [10/16] 0.0, 128
        %381 = vxpose.xlu0.b32.cont [11/16] 0.0, 128
        %382 = vxpose.xlu0.b32.cont [12/16] 0.0, 128
        %383 = vxpose.xlu0.b32.cont [13/16] 0.0, 128
        %384 = vxpose.xlu0.b32.cont [14/16] 0.0, 128
        %385 = vxpose.xlu0.b32.cont [15/16] 0.0, 128
        %386 = vxpose.xlu0.b32.end [16/16] 0.0, 128
        %v387 = vpop.trf.xlu0
        %v388 = vpop.trf.xlu0
        %v389 = vpop.trf.xlu0
        %v390 = vpop.trf.xlu0
        %v391 = vpop.trf.xlu0
        %v392 = vpop.trf.xlu0
        %v393 = vpop.trf.xlu0
        %v394 = vpop.trf.xlu0
        %v395 = vpop.trf.xlu0
        %v396 = vpop.trf.xlu0
        %v397 = vpop.trf.xlu0
        %v398 = vpop.trf.xlu0
        %v399 = vpop.trf.xlu0
        %v400 = vpop.trf.xlu0
        %v401 = vpop.trf.xlu0
        %v402 = vpop.trf.xlu0
        %v403 = vpack.c.bf16 %v362, %v362
        %vm404 = vcmask 60416
        %405 = vst.msk [vmem:[%s279] sm:$0xf] %vm404, %v403
        %v406 = vpack.c.bf16 %v387, %v387
        %407 = vst.msk [vmem:[%s286] sm:$0xf] %vm404, %v406
        %v409 = vunpack.c.l.b16 %v403
        %v410 = vpack.c.b16 %v409, %v409
        %411 = vrot.lane.b32.xlu0 %v410, 64
        %v412 = vpop.permute.xlu0 %411
        %414 = vst.msk [vmem:[%s293] sm:$0xf] %vm404, %v412
        %415 = vrot.lane.b32.xlu0 %v410, 120
        %v416 = vpop.permute.xlu0 %415
        %s418 = scalar_lea.vmem %s279, 4 [#allocation7]
        %419 = vst.msk [vmem:[%s418] sm:$0xf] %vm404, %v416
        %v420 = vpack.c.bf16 %v388, %v388
        %s421 = scalar_lea.vmem %s286, 4 [#allocation8]
        %422 = vst.msk [vmem:[%s421] sm:$0xf] %vm404, %v420
        %423 = vrot.lane.b32.xlu0 %v410, 56
        %v424 = vpop.permute.xlu0 %423
        %s426 = scalar_lea.vmem %s293, 4 [#allocation10]
        %427 = vst.msk [vmem:[%s426] sm:$0xf] %vm404, %v424
        %428 = vrot.lane.b32.xlu0 %v410, 112
        %v429 = vpop.permute.xlu0 %428
        %s431 = scalar_lea.vmem %s279, 8 [#allocation7]
        %432 = vst.msk [vmem:[%s431] sm:$0xf] %vm404, %v429
        %v433 = vpack.c.bf16 %v389, %v389
        %s434 = scalar_lea.vmem %s286, 8 [#allocation8]
        %435 = vst.msk [vmem:[%s434] sm:$0xf] %vm404, %v433
        %436 = vrot.lane.b32.xlu0 %v410, 48
        %v437 = vpop.permute.xlu0 %436
        %s439 = scalar_lea.vmem %s293, 8 [#allocation10]
        %440 = vst.msk [vmem:[%s439] sm:$0xf] %vm404, %v437
        %441 = vrot.lane.b32.xlu0 %v410, 104
        %v442 = vpop.permute.xlu0 %441
        %s444 = scalar_lea.vmem %s279, 12 [#allocation7]
        %445 = vst.msk [vmem:[%s444] sm:$0xf] %vm404, %v442
        %v446 = vpack.c.bf16 %v390, %v390
        %s447 = scalar_lea.vmem %s286, 12 [#allocation8]
        %448 = vst.msk [vmem:[%s447] sm:$0xf] %vm404, %v446
        %449 = vrot.lane.b32.xlu0 %v410, 40
        %v450 = vpop.permute.xlu0 %449
        %s452 = scalar_lea.vmem %s293, 12 [#allocation10]
        %453 = vst.msk [vmem:[%s452] sm:$0xf] %vm404, %v450
        %s454 = sand.u32 %s119, 1
        %s455 = scalar_lea.sflag [#allocation4], %s454
        %s456 = sand.u32 %s119, 1
        %s457 = smul.addr %s456, 16
        %s458 = scalar_lea.vmem [#allocation7], %s457
        %s459 = sand.u32 %s27, 1
        %s460 = scalar_lea.sflag [#allocation9], %s459
        %s461 = sand.u32 %s147, 1
        %s462 = smul.addr %s461, 16
        %s463 = scalar_lea.vmem [#allocation8], %s462
        %s464 = sand.u32 %s27, 1
        %s465 = scalar_lea.sflag [#allocation9], %s464
        %s466 = sand.u32 %s175, 1
        %s467 = smul.addr %s466, 16
        %s468 = scalar_lea.vmem [#allocation10], %s467
        // Predicated region
        $region41: #{tpu_custom_call.1} parent=31 // pred_check
          %p469 = pneg %p129
        $region42: #{tpu_custom_call.1} parent=31 // pred_check_branch
          %471 = sbr.rel (%p469) target = $region44
        $region43: #{tpu_custom_call.1} parent=31 // pred_region
          %s472 = smul.u32 4, %s31
          %s474 = ssub.s32 256, 256
          %475 = vsyncadd %s455, %s474
          %s476 = sadd.s32 %s32, %s472
          %s477 = smul.addr %s476, 64
          %s478 = scalar_lea.hbm %s3, %s477
          %s479 = sshll.u32 %s458, 4
          %s480 = int_to_ptr.vmem [resolvable:$true] %s479
          %485 = dma.vmem_to_hbm [thread:$0]  %s480, 256, %s478, %s455, 64, 64, 4
        $region44: #{tpu_custom_call.1} parent=31 // pred_fallthru
          _
        // Predicated region
        $region45: #{tpu_custom_call.1} parent=31 // pred_check
          %p486 = pneg %p157
        $region46: #{tpu_custom_call.1} parent=31 // pred_check_branch
          %488 = sbr.rel (%p486) target = $region48
        $region47: #{tpu_custom_call.1} parent=31 // pred_region
          %s489 = smul.u32 4, %s31
          %s491 = ssub.s32 256, 256
          %492 = vsyncadd %s460, %s491
          %s493 = sadd.s32 %s32, %s489
          %s494 = smul.addr %s493, 64
          %s495 = scalar_lea.hbm %s4, %s494
          %s496 = sshll.u32 %s463, 4
          %s497 = int_to_ptr.vmem [resolvable:$true] %s496
          %502 = dma.vmem_to_hbm [thread:$0]  %s497, 256, %s495, %s460, 64, 64, 4
        $region48: #{tpu_custom_call.1} parent=31 // pred_fallthru
          _
        // Predicated region
        $region49: #{tpu_custom_call.1} parent=31 // pred_check
          %p503 = pneg %p185
        $region50: #{tpu_custom_call.1} parent=31 // pred_check_branch
          %505 = sbr.rel (%p503) target = $region52
        $region51: #{tpu_custom_call.1} parent=31 // pred_region
          %s506 = smul.u32 4, %s31
          %s508 = ssub.s32 256, 256
          %509 = vsyncadd %s465, %s508
          %s510 = sadd.s32 %s32, %s506
          %s511 = smul.addr %s510, 64
          %s512 = scalar_lea.hbm %s5, %s511
          %s513 = sshll.u32 %s468, 4
          %s514 = int_to_ptr.vmem [resolvable:$true] %s513
          %519 = dma.vmem_to_hbm [thread:$0]  %s514, 256, %s512, %s465, 64, 64, 4
        $region52: #{tpu_custom_call.1} parent=31 // pred_fallthru
          _
      $region32: #{tpu_custom_call.1} parent=5 // pred_fallthru
        _
      %p520 = scmp.le.s32.totalorder 2, %s22
      // Predicated region
      $region53: #{tpu_custom_call.1} parent=5 // pred_check
        %p521 = pneg %p520
      $region54: #{tpu_custom_call.1} parent=5 // pred_check_branch
        %523 = sbr.rel (%p521) target = $region56
      $region55: #{tpu_custom_call.1} parent=5 // pred_region
        %s524 = ssub.s32 %s22, 2
        // Predicated region
        $region57: #{tpu_custom_call.1} parent=55 // pred_check
          %p525 = pneg %p135
        $region58: #{tpu_custom_call.1} parent=55 // pred_check_branch
          %527 = sbr.rel (%p525) target = $region60
        $region59: #{tpu_custom_call.1} parent=55 // pred_region
          %s528 = sand.u32 %s120, 1
          %s529 = scalar_lea.sflag [#allocation4], %s528
          %s530 = sand.u32 %s120, 1
          %s531 = smul.addr %s530, 16
          %s532 = scalar_lea.vmem [#allocation7], %s531
          %533 = dma.done %s529, 256
        $region60: #{tpu_custom_call.1} parent=55 // pred_fallthru
          _
        // Predicated region
        $region61: #{tpu_custom_call.1} parent=55 // pred_check
          %p534 = pneg %p163
        $region62: #{tpu_custom_call.1} parent=55 // pred_check_branch
          %536 = sbr.rel (%p534) target = $region64
        $region63: #{tpu_custom_call.1} parent=55 // pred_region
          %s537 = sand.u32 %s28, 1
          %s538 = scalar_lea.sflag [#allocation9], %s537
          %s539 = sand.u32 %s148, 1
          %s540 = smul.addr %s539, 16
          %s541 = scalar_lea.vmem [#allocation8], %s540
          %542 = dma.done %s538, 256
        $region64: #{tpu_custom_call.1} parent=55 // pred_fallthru
          _
        // Predicated region
        $region65: #{tpu_custom_call.1} parent=55 // pred_check
          %p543 = pneg %p191
        $region66: #{tpu_custom_call.1} parent=55 // pred_check_branch
          %545 = sbr.rel (%p543) target = $region68
        $region67: #{tpu_custom_call.1} parent=55 // pred_region
          %s546 = sand.u32 %s28, 1
          %s547 = scalar_lea.sflag [#allocation9], %s546
          %s548 = sand.u32 %s176, 1
          %s549 = smul.addr %s548, 16
          %s550 = scalar_lea.vmem [#allocation10], %s549
          %551 = dma.done %s547, 256
        $region68: #{tpu_custom_call.1} parent=55 // pred_fallthru
          _
      $region56: #{tpu_custom_call.1} parent=5 // pred_fallthru
        _
    $region6: #{tpu_custom_call.1} parent=1 // loop_footer
      %s26 = sadd.s32 1, %s22
    $region7: #{tpu_custom_call.1} parent=1 // loop_footer_branch
      %21 = sbr.rel target = $region3
    $region8: #{tpu_custom_call.1} parent=1 // loop_exit
      _
    %552 = vsyncpa [#allocation3], 1
    %s553 = scalar_lea.sflag [#allocation3], 1
    %554 = vsyncpa %s553, 1
    %555 = vsyncpa [#allocation6], 1
    %556 = vsyncpa [#allocation4], 1
    %s557 = scalar_lea.sflag [#allocation4], 1
    %558 = vsyncpa %s557, 1
    %559 = vsyncpa [#allocation9], 1
    %s560 = scalar_lea.sflag [#allocation9], 1
    %561 = vsyncpa %s560, 1

</llo_original>
